<compile_context>
chip_gen: v6e
topology: v6e:2x2x1
jax: 0.10.0
libtpu: 0.0.40
codegen_flags: <defaults>
</compile_context>

<pallas_src>
import functools

import jax
import jax.numpy as jnp
from jax import lax
from jax.experimental import pallas as pl
from jax.experimental.pallas import tpu as pltpu

_LANE = 128
_SUBLANE = 8
_NEG_INF = -1e30


def _round_up(x, m):
    return (x + m - 1) // m * m


# --------------------------------------------------------------------------
# Kernel: one grid step == K decode steps (statically unrolled).
# --------------------------------------------------------------------------
def _decoder_kernel(tok_ref, h0_ref, emb_ref, w_rz_ref, w_in_ref, w_hn_ref,
                    b_rz_ref, b_in_ref, b_hn_ref, wout_ref, bout_ref,
                    logp_ref, hnew_ref, *, t_real):
    Bp, Hp = hnew_ref.shape
    Vp = emb_ref.shape[0]
    K = tok_ref.shape[0]

    g = pl.program_id(0)
    n_blocks = pl.num_programs(0)
    rem = t_real % K          # number of valid steps in the last block (0 == all)

    @pl.when(g == 0)
    def _init():
        hnew_ref[...] = h0_ref[...]

    h = hnew_ref[...]                                            # (Bp, Hp) f32

    for k in range(K):                                           # static unroll
        # ---- in-kernel embedding gather: one-hot (Bp,Vp) @ emb (Vp,Hp) on MXU
        tok = tok_ref[k]                                         # (Bp, 1) int32
        onehot = jnp.where(
            tok == lax.broadcasted_iota(jnp.int32, (Bp, Vp), 1),
            1.0, 0.0).astype(jnp.bfloat16)                       # exact 0/1 in bf16
        x = jnp.dot(onehot, emb_ref[...], preferred_element_type=jnp.float32)
        x = jnp.maximum(x, 0.0)                                  # ReLU (f32)
        x_b = x.astype(jnp.bfloat16)
        h_b = h.astype(jnp.bfloat16)

        # ---- fused r/z gates: [x | h] @ W_rz  (one (Bp,2Hp)@(2Hp,2Hp) matmul)
        xh = jnp.concatenate([x_b, h_b], axis=-1)                # (Bp, 2Hp) bf16
        rz = jnp.dot(xh, w_rz_ref[...],
                     preferred_element_type=jnp.float32) + b_rz_ref[...]
        r = jax.nn.sigmoid(rz[:, :Hp])
        z = jax.nn.sigmoid(rz[:, Hp:])

        # ---- n gate (W_hh_n h kept separate: n = tanh(i_n + r*(h_n)))
        i_n = jnp.dot(x_b, w_in_ref[...],
                      preferred_element_type=jnp.float32) + b_in_ref[...]
        h_n = jnp.dot(h_b, w_hn_ref[...],
                      preferred_element_type=jnp.float32) + b_hn_ref[...]
        n = jnp.tanh(i_n + r * h_n)
        h_new = (1.0 - z) * n + z * h                            # (Bp, Hp) f32

        # ---- output projection + log-softmax (padded vocab lanes carry -1e30)
        logits = jnp.dot(h_new.astype(jnp.bfloat16), wout_ref[...],
                         preferred_element_type=jnp.float32) + bout_ref[...]
        m = jnp.max(logits, axis=-1, keepdims=True)
        shifted = logits - m
        lse = jnp.log(jnp.sum(jnp.exp(shifted), axis=-1, keepdims=True))
        logp_ref[k] = shifted - lse

        # padded tail steps (beyond t_real) must not advance the hidden state
        if rem != 0 and k >= rem:
            h_new = jnp.where(g < n_blocks - 1, h_new, h)
        h = h_new

    hnew_ref[...] = h                                            # one vst / block


# --------------------------------------------------------------------------
# Wrapper: pad to lane-dense shapes, run the whole T-step decode in one call.
# --------------------------------------------------------------------------
def _vmem_limit_bytes(Bp, Hp, Vp, K):
    w = 2 * (Vp * Hp + 4 * Hp * Hp + 2 * Hp * Hp + Hp * Vp)      # bf16 weights
    b = 4 * (2 * Hp + 2 * Hp + 2 * Vp)                           # f32 biases
    io = 4 * (K * Bp + 2 * Bp * Hp + K * Bp * Vp)                # tokens / h / logp
    est = 2 * (w + b + io) + (4 << 20)                           # x2 buffering + headroom
    return int(min(128 << 20, max(32 << 20, est)))


@functools.partial(jax.jit, static_argnames=("B", "H", "V", "unroll"))
def _decode(tokens_tb, hidden, kparams, *, B, H, V, unroll=4):
    T = tokens_tb.shape[0]
    K = max(1, min(unroll, T))          # decode steps per grid iteration
    Hp, Vp = kparams["w_out"].shape
    Bp = _round_up(B, _SUBLANE)
    Tp = _round_up(T, K)
    n_blocks = Tp // K

    tok_p = jnp.zeros((Tp, Bp, 1), jnp.int32).at[:T, :B, 0].set(
        tokens_tb.astype(jnp.int32))
    h0_p = jnp.zeros((Bp, Hp), jnp.float32).at[:B, :H].set(
        hidden[0].astype(jnp.float32))

    kernel = functools.partial(_decoder_kernel, t_real=T)

    logp_p, hnew_p = pl.pallas_call(
        kernel,
        out_shape=(
            jax.ShapeDtypeStruct((Tp, Bp, Vp), jnp.float32),
            jax.ShapeDtypeStruct((Bp, Hp), jnp.float32),
        ),
        grid_spec=pltpu.PrefetchScalarGridSpec(
            num_scalar_prefetch=0,
            grid=(n_blocks,),
            in_specs=[
                pl.BlockSpec((K, Bp, 1), lambda g: (g, 0, 0)),     # tokens, K per block
                pl.BlockSpec((Bp, Hp), lambda g: (0, 0)),          # initial hidden
                pl.BlockSpec((Vp, Hp), lambda g: (0, 0)),          # embedding (resident)
                pl.BlockSpec((2 * Hp, 2 * Hp), lambda g: (0, 0)),  # fused r/z weight
                pl.BlockSpec((Hp, Hp), lambda g: (0, 0)),          # W_ih_n^T
                pl.BlockSpec((Hp, Hp), lambda g: (0, 0)),          # W_hh_n^T
                pl.BlockSpec((1, 2 * Hp), lambda g: (0, 0)),       # b_rz (= b_ih+b_hh)
                pl.BlockSpec((1, Hp), lambda g: (0, 0)),           # b_ih_n
                pl.BlockSpec((1, Hp), lambda g: (0, 0)),           # b_hh_n
                pl.BlockSpec((Hp, Vp), lambda g: (0, 0)),          # W_out^T
                pl.BlockSpec((1, Vp), lambda g: (0, 0)),           # b_out (-1e30 pad)
            ],
            out_specs=(
                pl.BlockSpec((K, Bp, Vp), lambda g: (g, 0, 0)),    # per-step log-probs
                pl.BlockSpec((Bp, Hp), lambda g: (0, 0)),          # hidden carry/out
            ),
        ),
        compiler_params=pltpu.CompilerParams(
            dimension_semantics=("arbitrary",),   # sequential dependence via hidden
            vmem_limit_bytes=_vmem_limit_bytes(Bp, Hp, Vp, K),
        ),
        # TODO(synk): for production-scale vocab on v7x (64 MiB VMEM), single-buffer
        # the weight tables (pipeline_mode=pl.Buffered(1)), tile W_out over V with an
        # online logsumexp, and DMA-gather embedding rows instead of the one-hot
        # matmul; add a leading "parallel" batch-tile axis to use both v7x TCs.
    )(tok_p, h0_p,
      kparams["emb"], kparams["w_rz"], kparams["w_in"], kparams["w_hn"],
      kparams["b_rz"], kparams["b_in"], kparams["b_hn"],
      kparams["w_out"], kparams["b_out"])

    return logp_p[:T, :B, :V], hnew_p[:B, :H]


def decoder_rnn_forward(tokens, hidden, kparams, *, B, H, V, encoder_output=None):
    """Single decode step — mirrors DecoderRNN.forward.

    tokens: (B,) int32; hidden: (1, B, H) f32.
    Returns (log_probs (B, V), new_hidden (1, B, H), None).
    """
    del encoder_output
    logp, h_new = _decode(tokens[None, :], hidden, kparams, B=B, H=H, V=V)
    return logp[0], h_new[None, :, :], None


def decoder_rnn_decode(tokens_seq, hidden, kparams, *, B, H, V):
    """T decode steps in ONE pallas_call (weights stay VMEM-resident).

    tokens_seq: (T, B) int32. Returns (log_probs (T, B, V), hidden (1, B, H), None).
    """
    logp, h_new = _decode(tokens_seq, hidden, kparams, B=B, H=H, V=V)
    return logp, h_new[None, :, :], None


# --------------------------------------------------------------------------
# Parameter construction (logical, PyTorch-layout-equivalent) + kernel packing.
# --------------------------------------------------------------------------
def make_params(key, vocab_size, hidden_size):
    ks = jax.random.split(key, 7)
    s = 1.0 / jnp.sqrt(hidden_size)
    return {
        "embedding": jax.random.normal(ks[0], (vocab_size, hidden_size), jnp.float32),
        # pre-transposed to [in, out]; gate order (r, z, n) along the out axis
        "w_ih_t": jax.random.uniform(ks[1], (hidden_size, 3 * hidden_size), jnp.float32, -s, s),
        "w_hh_t": jax.random.uniform(ks[2], (hidden_size, 3 * hidden_size), jnp.float32, -s, s),
        "b_ih": jax.random.uniform(ks[3], (1, 3 * hidden_size), jnp.float32, -s, s),
        "b_hh": jax.random.uniform(ks[4], (1, 3 * hidden_size), jnp.float32, -s, s),
        "w_out_t": jax.random.uniform(ks[5], (hidden_size, vocab_size), jnp.float32, -s, s),
        "b_out": jax.random.uniform(ks[6], (1, vocab_size), jnp.float32, -s, s),
    }


def prepare_kernel_params(params):
    """Pad H, V to 128-lane slabs; fuse r/z weights; bf16 weight storage; f32 biases."""
    V, H = params["embedding"].shape
    Hp = _round_up(H, _LANE)
    Vp = _round_up(V, _LANE)

    emb_p = jnp.zeros((Vp, Hp), jnp.float32).at[:V, :H].set(params["embedding"])

    w_ih = params["w_ih_t"]   # (H, 3H) gate order r,z,n along out axis
    w_hh = params["w_hh_t"]
    b_ih = params["b_ih"]     # (1, 3H)
    b_hh = params["b_hh"]

    # fused r/z weight: rows [0:H]=input, rows [Hp:Hp+H]=hidden; gate g in cols [g*Hp:g*Hp+H]
    w_rz = jnp.zeros((2 * Hp, 2 * Hp), jnp.float32)
    b_rz = jnp.zeros((1, 2 * Hp), jnp.float32)
    for gidx in range(2):     # 0 -> r, 1 -> z
        sl = slice(gidx * H, (gidx + 1) * H)
        w_rz = w_rz.at[:H, gidx * Hp:gidx * Hp + H].set(w_ih[:, sl])
        w_rz = w_rz.at[Hp:Hp + H, gidx * Hp:gidx * Hp + H].set(w_hh[:, sl])
        b_rz = b_rz.at[:, gidx * Hp:gidx * Hp + H].set(b_ih[:, sl] + b_hh[:, sl])

    # n gate kept separate (PyTorch: n = tanh(i_n + r*(W_hh_n h + b_hh_n)))
    w_in = jnp.zeros((Hp, Hp), jnp.float32).at[:H, :H].set(w_ih[:, 2 * H:3 * H])
    b_in = jnp.zeros((1, Hp), jnp.float32).at[:, :H].set(b_ih[:, 2 * H:3 * H])
    w_hn = jnp.zeros((Hp, Hp), jnp.float32).at[:H, :H].set(w_hh[:, 2 * H:3 * H])
    b_hn = jnp.zeros((1, Hp), jnp.float32).at[:, :H].set(b_hh[:, 2 * H:3 * H])

    w_out_p = jnp.zeros((Hp, Vp), jnp.float32).at[:H, :V].set(params["w_out_t"])
    b_out_p = jnp.full((1, Vp), _NEG_INF, jnp.float32).at[:, :V].set(params["b_out"])

    return {
        "emb": emb_p.astype(jnp.bfloat16),
        "w_rz": w_rz.astype(jnp.bfloat16),
        "w_in": w_in.astype(jnp.bfloat16),
        "w_hn": w_hn.astype(jnp.bfloat16),
        "b_rz": b_rz,
        "b_in": b_in,
        "b_hn": b_hn,
        "w_out": w_out_p.astype(jnp.bfloat16),
        "b_out": b_out_p,
    }


# --------------------------------------------------------------------------
# Pure-JAX reference (mirrors the bf16 weight storage / f32 accumulation).
# --------------------------------------------------------------------------
def reference_forward(tokens, hidden, params):
    H = params["w_ih_t"].shape[0]
    emb = params["embedding"].astype(jnp.bfloat16)
    x = jnp.maximum(jnp.take(emb, tokens, axis=0).astype(jnp.float32), 0.0)
    h = hidden[0]
    gi = jnp.dot(x.astype(jnp.bfloat16), params["w_ih_t"].astype(jnp.bfloat16),
                 preferred_element_type=jnp.float32) + params["b_ih"]
    gh = jnp.dot(h.astype(jnp.bfloat16), params["w_hh_t"].astype(jnp.bfloat16),
                 preferred_element_type=jnp.float32) + params["b_hh"]
    r = jax.nn.sigmoid(gi[:, :H] + gh[:, :H])
    z = jax.nn.sigmoid(gi[:, H:2 * H] + gh[:, H:2 * H])
    n = jnp.tanh(gi[:, 2 * H:] + r * gh[:, 2 * H:])
    h_new = (1.0 - z) * n + z * h
    logits = jnp.dot(h_new.astype(jnp.bfloat16), params["w_out_t"].astype(jnp.bfloat16),
                     preferred_element_type=jnp.float32) + params["b_out"]
    logp = jax.nn.log_softmax(logits, axis=1)
    return logp, h_new[None], None


if __name__ == "__main__":
    BATCH = 8
    HIDDEN = 32
    VOCAB = 48
    STEPS = 6

    key = jax.random.PRNGKey(0)
    kp, kt, ks = jax.random.split(key, 3)
    params = make_params(kp, VOCAB, HIDDEN)
    kparams = prepare_kernel_params(params)

    tokens = jax.random.randint(kt, (BATCH,), 0, VOCAB, dtype=jnp.int32)
    hidden0 = jnp.zeros((1, BATCH, HIDDEN), jnp.float32)      # init_hidden equivalent

    # ---- single step (== DecoderRNN.forward) --------------------------------
    logp, h_new, _ = decoder_rnn_forward(tokens, hidden0, kparams,
                                         B=BATCH, H=HIDDEN, V=VOCAB)
    jax.block_until_ready((logp, h_new))

    ref_logp, ref_h, _ = reference_forward(tokens, hidden0, params)
    assert logp.shape == (BATCH, VOCAB) and h_new.shape == (1, BATCH, HIDDEN)
    assert jnp.allclose(logp, ref_logp, atol=2e-3, rtol=2e-3)
    assert jnp.allclose(h_new, ref_h, atol=2e-3, rtol=2e-3)

    # ---- multi-step decode: whole loop inside ONE pallas_call ---------------
    tokens_seq = jax.random.randint(ks, (STEPS, BATCH), 0, VOCAB, dtype=jnp.int32)
    logp_seq, h_seq, _ = decoder_rnn_decode(tokens_seq, hidden0, kparams,
                                            B=BATCH, H=HIDDEN, V=VOCAB)
    jax.block_until_ready((logp_seq, h_seq))

    h_ref = hidden0
    ref_steps = []
    for t in range(STEPS):
        lp_t, h_ref, _ = reference_forward(tokens_seq[t], h_ref, params)
        ref_steps.append(lp_t)
    ref_seq = jnp.stack(ref_steps)

    assert logp_seq.shape == (STEPS, BATCH, VOCAB)
    assert h_seq.shape == (1, BATCH, HIDDEN)
    assert jnp.allclose(logp_seq, ref_seq, atol=5e-3, rtol=5e-3)
    assert jnp.allclose(h_seq, h_ref, atol=5e-3, rtol=5e-3)

    print("KERNEL_OK")
</pallas_src>

<mosaic_0001>
module attributes {stable_mosaic.version = 11 : i64} {
  func.func @_decoder_kernel(%arg0: i32, %arg1: memref<1x8x1xi32, #tpu.memory_space<vmem>>, %arg2: memref<8x128xf32, #tpu.memory_space<vmem>>, %arg3: memref<128x128xbf16, #tpu.memory_space<vmem>>, %arg4: memref<256x256xbf16, #tpu.memory_space<vmem>>, %arg5: memref<128x128xbf16, #tpu.memory_space<vmem>>, %arg6: memref<128x128xbf16, #tpu.memory_space<vmem>>, %arg7: memref<1x256xf32, #tpu.memory_space<vmem>>, %arg8: memref<1x128xf32, #tpu.memory_space<vmem>>, %arg9: memref<1x128xf32, #tpu.memory_space<vmem>>, %arg10: memref<128x128xbf16, #tpu.memory_space<vmem>>, %arg11: memref<1x128xf32, #tpu.memory_space<vmem>>, %arg12: memref<1x8x128xf32, #tpu.memory_space<vmem>>, %arg13: memref<8x128xf32, #tpu.memory_space<vmem>>) attributes {dimension_semantics = [#tpu.dimension_semantics<arbitrary>], iteration_bounds = array<i64: 1>, scalar_prefetch = 0 : i64, scratch_operands = 0 : i64, tpu.core_type = #tpu.core_type<tc>, window_params = [{transform_indices = @transform_0, window_bounds = array<i64: 1, 8, 1>}, {pipeline_mode = #tpu.pipeline_mode<synchronous>, transform_indices = @transform_1, window_bounds = array<i64: 8, 128>}, {pipeline_mode = #tpu.pipeline_mode<synchronous>, transform_indices = @transform_2, window_bounds = array<i64: 128, 128>}, {pipeline_mode = #tpu.pipeline_mode<synchronous>, transform_indices = @transform_3, window_bounds = array<i64: 256, 256>}, {pipeline_mode = #tpu.pipeline_mode<synchronous>, transform_indices = @transform_4, window_bounds = array<i64: 128, 128>}, {pipeline_mode = #tpu.pipeline_mode<synchronous>, transform_indices = @transform_5, window_bounds = array<i64: 128, 128>}, {pipeline_mode = #tpu.pipeline_mode<synchronous>, transform_indices = @transform_6, window_bounds = array<i64: 1, 256>}, {pipeline_mode = #tpu.pipeline_mode<synchronous>, transform_indices = @transform_7, window_bounds = array<i64: 1, 128>}, {pipeline_mode = #tpu.pipeline_mode<synchronous>, transform_indices = @transform_8, window_bounds = array<i64: 1, 128>}, {pipeline_mode = #tpu.pipeline_mode<synchronous>, transform_indices = @transform_9, window_bounds = array<i64: 128, 128>}, {pipeline_mode = #tpu.pipeline_mode<synchronous>, transform_indices = @transform_10, window_bounds = array<i64: 1, 128>}, {transform_indices = @transform_11, window_bounds = array<i64: 1, 8, 128>}, {pipeline_mode = #tpu.pipeline_mode<synchronous>, transform_indices = @transform_12, window_bounds = array<i64: 8, 128>}]} {
    %c0_i32 = arith.constant 0 : i32
    %0 = arith.cmpi eq, %arg0, %c0_i32 : i32
    %1 = arith.extui %0 : i1 to i32
    %c0_i32_0 = arith.constant 0 : i32
    %2 = arith.cmpi ne, %1, %c0_i32_0 : i32
    scf.if %2 {
      %c0_40 = arith.constant 0 : index
      %c0_41 = arith.constant 0 : index
      %75 = vector.load %arg2[%c0_40, %c0_41] : memref<8x128xf32, #tpu.memory_space<vmem>>, vector<8x128xf32>
      %c0_42 = arith.constant 0 : index
      %c0_43 = arith.constant 0 : index
      %76 = vector.load %arg13[%c0_42, %c0_43] : memref<8x128xf32, #tpu.memory_space<vmem>>, vector<8x128xf32>
      tpu.vector_store %arg13[%c0_42, %c0_43], %75 {strides = array<i32>} : memref<8x128xf32, #tpu.memory_space<vmem>>, vector<8x128xf32>,
    } else {
    }
    %c0 = arith.constant 0 : index
    %c0_1 = arith.constant 0 : index
    %3 = vector.load %arg13[%c0, %c0_1] : memref<8x128xf32, #tpu.memory_space<vmem>>, vector<8x128xf32>
    %c0_2 = arith.constant 0 : index
    %c0_3 = arith.constant 0 : index
    %c0_4 = arith.constant 0 : index
    %4 = vector.load %arg1[%c0_2, %c0_3, %c0_4] : memref<1x8x1xi32, #tpu.memory_space<vmem>>, vector<1x8x1xi32>
    %5 = vector.shape_cast %4 : vector<1x8x1xi32> to vector<8x1xi32>
    %6 = tpu.iota {dimensions = array<i32: 1>} : vector<8x128xi32>
    %7 = vector.broadcast %5 : vector<8x1xi32> to vector<8x128xi32>
    %8 = arith.cmpi eq, %7, %6 : vector<8x128xi32>
    %cst = arith.constant 1.000000e+00 : f32
    %cst_5 = arith.constant 0.000000e+00 : f32
    %9 = vector.broadcast %cst : f32 to vector<8x128xf32>
    %10 = vector.broadcast %cst_5 : f32 to vector<8x128xf32>
    %11 = arith.select %8, %9, %10 : vector<8x128xi1>, vector<8x128xf32>
    %12 = arith.truncf %11 : vector<8x128xf32> to vector<8x128xbf16>
    %c0_6 = arith.constant 0 : index
    %c0_7 = arith.constant 0 : index
    %13 = vector.load %arg3[%c0_6, %c0_7] : memref<128x128xbf16, #tpu.memory_space<vmem>>, vector<128x128xbf16>
    %cst_8 = arith.constant dense<0.000000e+00> : vector<8x128xf32>
    %14 = tpu.matmul %12, %13, %cst_8 {dimension_numbers = #tpu.dot_dimension_numbers<[1], [0], [0], [1], [0, 0, 1, 1], [], []>} : vector<8x128xbf16>, vector<128x128xbf16>, vector<8x128xf32> -> vector<8x128xf32>
    %cst_9 = arith.constant 0.000000e+00 : f32
    %15 = vector.broadcast %cst_9 : f32 to vector<8x128xf32>
    %16 = arith.maximumf %14, %15 : vector<8x128xf32>
    %17 = arith.truncf %16 : vector<8x128xf32> to vector<8x128xbf16>
    %18 = arith.truncf %3 : vector<8x128xf32> to vector<8x128xbf16>
    %19 = tpu.concatenate %17, %18 in 1 : vector<8x128xbf16>, vector<8x128xbf16> -> vector<8x256xbf16>
    %c0_10 = arith.constant 0 : index
    %c0_11 = arith.constant 0 : index
    %20 = vector.load %arg4[%c0_10, %c0_11] : memref<256x256xbf16, #tpu.memory_space<vmem>>, vector<256x256xbf16>
    %cst_12 = arith.constant dense<0.000000e+00> : vector<8x256xf32>
    %21 = tpu.matmul %19, %20, %cst_12 {dimension_numbers = #tpu.dot_dimension_numbers<[1], [0], [0], [1], [0, 0, 1, 1], [], []>} : vector<8x256xbf16>, vector<256x256xbf16>, vector<8x256xf32> -> vector<8x256xf32>
    %c0_13 = arith.constant 0 : index
    %c0_14 = arith.constant 0 : index
    %22 = vector.load %arg7[%c0_13, %c0_14] : memref<1x256xf32, #tpu.memory_space<vmem>>, vector<1x256xf32>
    %23 = vector.broadcast %22 : vector<1x256xf32> to vector<8x256xf32>
    %24 = arith.addf %21, %23 : vector<8x256xf32>
    %25 = vector.extract_strided_slice %24 {offsets = [0, 0], sizes = [8, 128], strides = [1, 1]} : vector<8x256xf32> to vector<8x128xf32>
    %26 = arith.negf %25 : vector<8x128xf32>
    %27 = math.exp %26 : vector<8x128xf32>
    %cst_15 = arith.constant 1.000000e+00 : f32
    %28 = vector.broadcast %cst_15 : f32 to vector<8x128xf32>
    %29 = arith.addf %28, %27 : vector<8x128xf32>
    %30 = arith.divf %28, %29 : vector<8x128xf32>
    %31 = vector.extract_strided_slice %24 {offsets = [0, 128], sizes = [8, 128], strides = [1, 1]} : vector<8x256xf32> to vector<8x128xf32>
    %32 = arith.negf %31 : vector<8x128xf32>
    %33 = math.exp %32 : vector<8x128xf32>
    %cst_16 = arith.constant 1.000000e+00 : f32
    %34 = vector.broadcast %cst_16 : f32 to vector<8x128xf32>
    %35 = arith.addf %34, %33 : vector<8x128xf32>
    %36 = arith.divf %34, %35 : vector<8x128xf32>
    %c0_17 = arith.constant 0 : index
    %c0_18 = arith.constant 0 : index
    %37 = vector.load %arg5[%c0_17, %c0_18] : memref<128x128xbf16, #tpu.memory_space<vmem>>, vector<128x128xbf16>
    %cst_19 = arith.constant dense<0.000000e+00> : vector<8x128xf32>
    %38 = tpu.matmul %17, %37, %cst_19 {dimension_numbers = #tpu.dot_dimension_numbers<[1], [0], [0], [1], [0, 0, 1, 1], [], []>} : vector<8x128xbf16>, vector<128x128xbf16>, vector<8x128xf32> -> vector<8x128xf32>
    %c0_20 = arith.constant 0 : index
    %c0_21 = arith.constant 0 : index
    %39 = vector.load %arg8[%c0_20, %c0_21] : memref<1x128xf32, #tpu.memory_space<vmem>>, vector<1x128xf32>
    %40 = vector.broadcast %39 : vector<1x128xf32> to vector<8x128xf32>
    %41 = arith.addf %38, %40 : vector<8x128xf32>
    %c0_22 = arith.constant 0 : index
    %c0_23 = arith.constant 0 : index
    %42 = vector.load %arg6[%c0_22, %c0_23] : memref<128x128xbf16, #tpu.memory_space<vmem>>, vector<128x128xbf16>
    %cst_24 = arith.constant dense<0.000000e+00> : vector<8x128xf32>
    %43 = tpu.matmul %18, %42, %cst_24 {dimension_numbers = #tpu.dot_dimension_numbers<[1], [0], [0], [1], [0, 0, 1, 1], [], []>} : vector<8x128xbf16>, vector<128x128xbf16>, vector<8x128xf32> -> vector<8x128xf32>
    %c0_25 = arith.constant 0 : index
    %c0_26 = arith.constant 0 : index
    %44 = vector.load %arg9[%c0_25, %c0_26] : memref<1x128xf32, #tpu.memory_space<vmem>>, vector<1x128xf32>
    %45 = vector.broadcast %44 : vector<1x128xf32> to vector<8x128xf32>
    %46 = arith.addf %43, %45 : vector<8x128xf32>
    %47 = arith.mulf %30, %46 : vector<8x128xf32>
    %48 = arith.addf %41, %47 : vector<8x128xf32>
    %49 = math.tanh %48 : vector<8x128xf32>
    %cst_27 = arith.constant 1.000000e+00 : f32
    %50 = vector.broadcast %cst_27 : f32 to vector<8x128xf32>
    %51 = arith.subf %50, %36 : vector<8x128xf32>
    %52 = arith.mulf %51, %49 : vector<8x128xf32>
    %53 = arith.mulf %36, %3 : vector<8x128xf32>
    %54 = arith.addf %52, %53 : vector<8x128xf32>
    %55 = arith.truncf %54 : vector<8x128xf32> to vector<8x128xbf16>
    %c0_28 = arith.constant 0 : index
    %c0_29 = arith.constant 0 : index
    %56 = vector.load %arg10[%c0_28, %c0_29] : memref<128x128xbf16, #tpu.memory_space<vmem>>, vector<128x128xbf16>
    %cst_30 = arith.constant dense<0.000000e+00> : vector<8x128xf32>
    %57 = tpu.matmul %55, %56, %cst_30 {dimension_numbers = #tpu.dot_dimension_numbers<[1], [0], [0], [1], [0, 0, 1, 1], [], []>} : vector<8x128xbf16>, vector<128x128xbf16>, vector<8x128xf32> -> vector<8x128xf32>
    %c0_31 = arith.constant 0 : index
    %c0_32 = arith.constant 0 : index
    %58 = vector.load %arg11[%c0_31, %c0_32] : memref<1x128xf32, #tpu.memory_space<vmem>>, vector<1x128xf32>
    %59 = vector.broadcast %58 : vector<1x128xf32> to vector<8x128xf32>
    %60 = arith.addf %57, %59 : vector<8x128xf32>
    %cst_33 = arith.constant dense<0xFF800000> : vector<8xf32>
    %61 = vector.multi_reduction <maximumf>, %60, %cst_33 [1] : vector<8x128xf32> to vector<8xf32>
    %62 = vector.shape_cast %61 : vector<8xf32> to vector<8x1xf32>
    %63 = vector.broadcast %62 : vector<8x1xf32> to vector<8x128xf32>
    %64 = arith.subf %60, %63 : vector<8x128xf32>
    %65 = math.exp %64 : vector<8x128xf32>
    %cst_34 = arith.constant dense<0.000000e+00> : vector<8xf32>
    %66 = vector.multi_reduction <add>, %65, %cst_34 [1] : vector<8x128xf32> to vector<8xf32>
    %67 = vector.shape_cast %66 : vector<8xf32> to vector<8x1xf32>
    %68 = math.log %67 : vector<8x1xf32>
    %69 = vector.broadcast %68 : vector<8x1xf32> to vector<8x128xf32>
    %70 = arith.subf %64, %69 : vector<8x128xf32>
    %c0_35 = arith.constant 0 : index
    %c0_36 = arith.constant 0 : index
    %c0_37 = arith.constant 0 : index
    %71 = vector.load %arg12[%c0_35, %c0_36, %c0_37] : memref<1x8x128xf32, #tpu.memory_space<vmem>>, vector<1x8x128xf32>
    %72 = vector.shape_cast %71 : vector<1x8x128xf32> to vector<8x128xf32>
    %73 = vector.shape_cast %70 : vector<8x128xf32> to vector<1x8x128xf32>
    tpu.vector_store %arg12[%c0_35, %c0_36, %c0_37], %73 {strides = array<i32>} : memref<1x8x128xf32, #tpu.memory_space<vmem>>, vector<1x8x128xf32>,
    %c0_38 = arith.constant 0 : index
    %c0_39 = arith.constant 0 : index
    %74 = vector.load %arg13[%c0_38, %c0_39] : memref<8x128xf32, #tpu.memory_space<vmem>>, vector<8x128xf32>
    tpu.vector_store %arg13[%c0_38, %c0_39], %54 {strides = array<i32>} : memref<8x128xf32, #tpu.memory_space<vmem>>, vector<8x128xf32>,
    return
  }
  func.func @transform_0(%arg0: i32) -> (i32, i32, i32) {
    %c0_i32 = arith.constant 0 : i32
    %c0_i32_0 = arith.constant 0 : i32
    %c0_i32_1 = arith.constant 0 : i32
    return %arg0, %c0_i32, %c0_i32_0 : i32, i32, i32
  }
  func.func @transform_1(%arg0: i32) -> (i32, i32) {
    %c0_i32 = arith.constant 0 : i32
    %c0_i32_0 = arith.constant 0 : i32
    %c0_i32_1 = arith.constant 0 : i32
    return %c0_i32, %c0_i32_0 : i32, i32
  }
  func.func @transform_2(%arg0: i32) -> (i32, i32) {
    %c0_i32 = arith.constant 0 : i32
    %c0_i32_0 = arith.constant 0 : i32
    %c0_i32_1 = arith.constant 0 : i32
    return %c0_i32, %c0_i32_0 : i32, i32
  }
  func.func @transform_3(%arg0: i32) -> (i32, i32) {
    %c0_i32 = arith.constant 0 : i32
    %c0_i32_0 = arith.constant 0 : i32
    %c0_i32_1 = arith.constant 0 : i32
    return %c0_i32, %c0_i32_0 : i32, i32
  }
  func.func @transform_4(%arg0: i32) -> (i32, i32) {
    %c0_i32 = arith.constant 0 : i32
    %c0_i32_0 = arith.constant 0 : i32
    %c0_i32_1 = arith.constant 0 : i32
    return %c0_i32, %c0_i32_0 : i32, i32
  }
  func.func @transform_5(%arg0: i32) -> (i32, i32) {
    %c0_i32 = arith.constant 0 : i32
    %c0_i32_0 = arith.constant 0 : i32
    %c0_i32_1 = arith.constant 0 : i32
    return %c0_i32, %c0_i32_0 : i32, i32
  }
  func.func @transform_6(%arg0: i32) -> (i32, i32) {
    %c0_i32 = arith.constant 0 : i32
    %c0_i32_0 = arith.constant 0 : i32
    %c0_i32_1 = arith.constant 0 : i32
    return %c0_i32, %c0_i32_0 : i32, i32
  }
  func.func @transform_7(%arg0: i32) -> (i32, i32) {
    %c0_i32 = arith.constant 0 : i32
    %c0_i32_0 = arith.constant 0 : i32
    %c0_i32_1 = arith.constant 0 : i32
    return %c0_i32, %c0_i32_0 : i32, i32
  }
  func.func @transform_8(%arg0: i32) -> (i32, i32) {
    %c0_i32 = arith.constant 0 : i32
    %c0_i32_0 = arith.constant 0 : i32
    %c0_i32_1 = arith.constant 0 : i32
    return %c0_i32, %c0_i32_0 : i32, i32
  }
  func.func @transform_9(%arg0: i32) -> (i32, i32) {
    %c0_i32 = arith.constant 0 : i32
    %c0_i32_0 = arith.constant 0 : i32
    %c0_i32_1 = arith.constant 0 : i32
    return %c0_i32, %c0_i32_0 : i32, i32
  }
  func.func @transform_10(%arg0: i32) -> (i32, i32) {
    %c0_i32 = arith.constant 0 : i32
    %c0_i32_0 = arith.constant 0 : i32
    %c0_i32_1 = arith.constant 0 : i32
    return %c0_i32, %c0_i32_0 : i32, i32
  }
  func.func @transform_11(%arg0: i32) -> (i32, i32, i32) {
    %c0_i32 = arith.constant 0 : i32
    %c0_i32_0 = arith.constant 0 : i32
    %c0_i32_1 = arith.constant 0 : i32
    return %arg0, %c0_i32, %c0_i32_0 : i32, i32, i32
  }
  func.func @transform_12(%arg0: i32) -> (i32, i32) {
    %c0_i32 = arith.constant 0 : i32
    %c0_i32_0 = arith.constant 0 : i32
    %c0_i32_1 = arith.constant 0 : i32
    return %c0_i32, %c0_i32_0 : i32, i32
  }
}

</mosaic_0001>

<llo_original>
// kernel: _decode.1
$region0: #{_decode.1}
  #allocation0 [shape = 'u32[]', space=smem, size = 0x4, offset = 0x4, fixed_abs, tag = 'smem constant byte address 0x4 - core index']
  #allocation1 [shape = 'u32[144,128]{1,0:T(1,128)}', space=vmem, size = 0x12000, scoped, tag = 'internal scratch']
  %s0 = inlined_call_operand.vmem [shape: s32[1,8,1], index: 0, kind: input, shape index: {}]
  %s1 = inlined_call_operand.vmem [shape: f32[8,128], index: 1, kind: input, shape index: {}]
  %s2 = inlined_call_operand.hbm [shape: bf16[128,128], index: 2, kind: input, shape index: {}]
  %s3 = inlined_call_operand.hbm [shape: bf16[256,256], index: 3, kind: input, shape index: {}]
  %s4 = inlined_call_operand.hbm [shape: bf16[128,128], index: 4, kind: input, shape index: {}]
  %s5 = inlined_call_operand.hbm [shape: bf16[128,128], index: 5, kind: input, shape index: {}]
  %s6 = inlined_call_operand.vmem [shape: f32[1,256], index: 6, kind: input, shape index: {}]
  %s7 = inlined_call_operand.vmem [shape: f32[1,128], index: 7, kind: input, shape index: {}]
  %s8 = inlined_call_operand.vmem [shape: f32[1,128], index: 8, kind: input, shape index: {}]
  %s9 = inlined_call_operand.hbm [shape: bf16[128,128], index: 9, kind: input, shape index: {}]
  %s10 = inlined_call_operand.vmem [shape: f32[1,128], index: 10, kind: input, shape index: {}]
  %s11 = inlined_call_operand.hbm [shape: f32[1,8,128], index: 11, kind: output, shape index: {0}]
  %s12 = inlined_call_operand.hbm [shape: f32[8,128], index: 12, kind: output, shape index: {1}]
  %13 = xla_tuple %s11, %s12
  %s14 = sld [smem:[#allocation0]]
  $region86: #{_decode.1} parent=0
    _
  %s16 = ssub.s32 1, %s14
  %s17 = scalar_select 0, %s16, %s14
  $region1: #{_decode.1} parent=0
    #allocation2 [shape = 'u8[32768]{0}', space=vmem, size = 0x8000, scoped, tag = 'input window, operand 2, single buffered']
    #allocation3 [shape = 's32[1]{0}', space=sflag, size = 0x4, scoped, tag = 'scoped memory for _decode.1']
    #allocation4 [shape = 's32[1]{0}', space=sflag, size = 0x4, scoped, tag = 'scoped memory for _decode.1']
    #allocation5 [shape = 'u8[131072]{0}', space=vmem, size = 0x20000, scoped, tag = 'input window, operand 3, single buffered']
    #allocation6 [shape = 's32[1]{0}', space=sflag, size = 0x4, scoped, tag = 'scoped memory for _decode.1']
    #allocation7 [shape = 'u8[32768]{0}', space=vmem, size = 0x8000, scoped, tag = 'input window, operand 4, single buffered']
    #allocation8 [shape = 'u8[32768]{0}', space=vmem, size = 0x8000, scoped, tag = 'input window, operand 5, single buffered']
    #allocation9 [shape = 's32[1]{0}', space=sflag, size = 0x4, scoped, tag = 'scoped memory for _decode.1']
    #allocation10 [shape = 'u8[32768]{0}', space=vmem, size = 0x8000, scoped, tag = 'input window, operand 9, single buffered']
    #allocation11 [shape = 'u8[4096]{0}', space=vmem, size = 0x1000, scoped, tag = 'output window, operand 0, single buffered']
    #allocation12 [shape = 'u8[4096]{0}', space=vmem, size = 0x1000, scoped, tag = 'output window, operand 1, single buffered']
    #allocation13 [shape = 's32[1]{0}', space=sflag, size = 0x4, scoped, tag = 'scoped memory for _decode.1']
    %18 = vsyncpa [#allocation3], 0
    %19 = vsyncpa [#allocation6], 0
    %20 = vsyncpa [#allocation9], 0
    %21 = vsyncpa [#allocation4], 0
    %22 = vsyncpa [#allocation13], 0
    // Predicated region
    $region2: #{_decode.1} parent=1 // pred_check
      _
    $region3: #{_decode.1} parent=1 // pred_check_branch
      %24 = sbr.rel (0) target = $region5
    $region4: #{_decode.1} parent=1 // pred_region
      _
    $region5: #{_decode.1} parent=1 // pred_fallthru
      _
    // Predicated region
    $region6: #{_decode.1} parent=1 // pred_check
      _
    $region7: #{_decode.1} parent=1 // pred_check_branch
      %26 = sbr.rel (0) target = $region9
    $region8: #{_decode.1} parent=1 // pred_region
      _
    $region9: #{_decode.1} parent=1 // pred_fallthru
      _
    // Predicated region
    $region10: #{_decode.1} parent=1 // pred_check
      _
    $region11: #{_decode.1} parent=1 // pred_check_branch
      %28 = sbr.rel (0) target = $region13
    $region12: #{_decode.1} parent=1 // pred_region
      %s30 = ssub.s32 1024, 1024
      %31 = vsyncadd [#allocation3], %s30
      %s32 = sshll.u32 [#allocation2], 4
      %s33 = int_to_ptr.vmem [resolvable:$true] %s32
      %38 = dma.hbm_to_vmem [thread:$0]  %s2, 1024, %s33, [#allocation3], 64, 64, 4
    $region13: #{_decode.1} parent=1 // pred_fallthru
      _
    // Predicated region
    $region14: #{_decode.1} parent=1 // pred_check
      _
    $region15: #{_decode.1} parent=1 // pred_check_branch
      %40 = sbr.rel (0) target = $region17
    $region16: #{_decode.1} parent=1 // pred_region
      %s42 = ssub.s32 4096, 4096
      %43 = vsyncadd [#allocation6], %s42
      %s44 = sshll.u32 [#allocation5], 4
      %s45 = int_to_ptr.vmem [resolvable:$true] %s44
      %50 = dma.hbm_to_vmem [thread:$0]  %s3, 4096, %s45, [#allocation6], 128, 128, 8
    $region17: #{_decode.1} parent=1 // pred_fallthru
      _
    // Predicated region
    $region18: #{_decode.1} parent=1 // pred_check
      _
    $region19: #{_decode.1} parent=1 // pred_check_branch
      %52 = sbr.rel (0) target = $region21
    $region20: #{_decode.1} parent=1 // pred_region
      %s54 = ssub.s32 1024, 1024
      %55 = vsyncadd [#allocation6], %s54
      %s56 = sshll.u32 [#allocation7], 4
      %s57 = int_to_ptr.vmem [resolvable:$true] %s56
      %62 = dma.hbm_to_vmem [thread:$0]  %s4, 1024, %s57, [#allocation6], 64, 64, 4
    $region21: #{_decode.1} parent=1 // pred_fallthru
      _
    // Predicated region
    $region22: #{_decode.1} parent=1 // pred_check
      _
    $region23: #{_decode.1} parent=1 // pred_check_branch
      %64 = sbr.rel (0) target = $region25
    $region24: #{_decode.1} parent=1 // pred_region
      %s66 = ssub.s32 1024, 1024
      %67 = vsyncadd [#allocation9], %s66
      %s68 = sshll.u32 [#allocation8], 4
      %s69 = int_to_ptr.vmem [resolvable:$true] %s68
      %74 = dma.hbm_to_vmem [thread:$0]  %s5, 1024, %s69, [#allocation9], 64, 64, 4
    $region25: #{_decode.1} parent=1 // pred_fallthru
      _
    // Predicated region
    $region26: #{_decode.1} parent=1 // pred_check
      _
    $region27: #{_decode.1} parent=1 // pred_check_branch
      %76 = sbr.rel (0) target = $region29
    $region28: #{_decode.1} parent=1 // pred_region
      _
    $region29: #{_decode.1} parent=1 // pred_fallthru
      _
    // Predicated region
    $region30: #{_decode.1} parent=1 // pred_check
      _
    $region31: #{_decode.1} parent=1 // pred_check_branch
      %78 = sbr.rel (0) target = $region33
    $region32: #{_decode.1} parent=1 // pred_region
      _
    $region33: #{_decode.1} parent=1 // pred_fallthru
      _
    // Predicated region
    $region34: #{_decode.1} parent=1 // pred_check
      _
    $region35: #{_decode.1} parent=1 // pred_check_branch
      %80 = sbr.rel (0) target = $region37
    $region36: #{_decode.1} parent=1 // pred_region
      _
    $region37: #{_decode.1} parent=1 // pred_fallthru
      _
    // Predicated region
    $region38: #{_decode.1} parent=1 // pred_check
      _
    $region39: #{_decode.1} parent=1 // pred_check_branch
      %82 = sbr.rel (0) target = $region41
    $region40: #{_decode.1} parent=1 // pred_region
      %s84 = ssub.s32 1024, 1024
      %85 = vsyncadd [#allocation9], %s84
      %s86 = sshll.u32 [#allocation10], 4
      %s87 = int_to_ptr.vmem [resolvable:$true] %s86
      %92 = dma.hbm_to_vmem [thread:$0]  %s9, 1024, %s87, [#allocation9], 64, 64, 4
    $region41: #{_decode.1} parent=1 // pred_fallthru
      _
    // Predicated region
    $region42: #{_decode.1} parent=1 // pred_check
      _
    $region43: #{_decode.1} parent=1 // pred_check_branch
      %94 = sbr.rel (0) target = $region45
    $region44: #{_decode.1} parent=1 // pred_region
      _
    $region45: #{_decode.1} parent=1 // pred_fallthru
      _
    // Predicated region
    $region46: #{_decode.1} parent=1 // pred_check
      _
    $region47: #{_decode.1} parent=1 // pred_check_branch
      %96 = sbr.rel (0) target = $region49
    $region48: #{_decode.1} parent=1 // pred_region
      %97 = dma.done [#allocation3], 1024
    $region49: #{_decode.1} parent=1 // pred_fallthru
      _
    // Predicated region
    $region50: #{_decode.1} parent=1 // pred_check
      _
    $region51: #{_decode.1} parent=1 // pred_check_branch
      %99 = sbr.rel (0) target = $region53
    $region52: #{_decode.1} parent=1 // pred_region
      %100 = dma.done [#allocation6], 4096
    $region53: #{_decode.1} parent=1 // pred_fallthru
      _
    // Predicated region
    $region54: #{_decode.1} parent=1 // pred_check
      _
    $region55: #{_decode.1} parent=1 // pred_check_branch
      %102 = sbr.rel (0) target = $region57
    $region56: #{_decode.1} parent=1 // pred_region
      %103 = dma.done [#allocation6], 1024
    $region57: #{_decode.1} parent=1 // pred_fallthru
      _
    // Predicated region
    $region58: #{_decode.1} parent=1 // pred_check
      _
    $region59: #{_decode.1} parent=1 // pred_check_branch
      %105 = sbr.rel (0) target = $region61
    $region60: #{_decode.1} parent=1 // pred_region
      %106 = dma.done [#allocation9], 1024
    $region61: #{_decode.1} parent=1 // pred_fallthru
      _
    // Predicated region
    $region62: #{_decode.1} parent=1 // pred_check
      _
    $region63: #{_decode.1} parent=1 // pred_check_branch
      %108 = sbr.rel (0) target = $region65
    $region64: #{_decode.1} parent=1 // pred_region
      %109 = dma.done [#allocation9], 1024
    $region65: #{_decode.1} parent=1 // pred_fallthru
      _
    %p111 = scmp.eq.s32.totalorder 0, 0
    // Predicated region
    $region66: #{_decode.1} parent=1 // pred_check
      %p112 = pneg %p111
    $region67: #{_decode.1} parent=1 // pred_check_branch
      %114 = sbr.rel (%p112) target = $region69
    $region68: #{_decode.1} parent=1 // pred_region
      %v115 = vld [vmem:[%s1] sm:$0xff]
      %116 = vst [vmem:[#allocation12] sm:$0xff] %v115
    $region69: #{_decode.1} parent=1 // pred_fallthru
      _
    %v117 = vld [vmem:[#allocation12] sm:$0xff]
    %v118 = vld [vmem:[%s0] sm:$0xff]
    %v119 = vlaneseq
    %v120 = vand.u32 %v119, 127
    %121 = vset.pattern.permute.xlu0 0
    %122 = vperm.xlu0 %121, %v118
    %v123 = vpop.permute.xlu0 %122
    %vm124 = vcmp.eq.s32.totalorder %v123, %v120
    %v125 = vsel %vm124, 1.0, 0.0
    %v126 = vpack.c.bf16 %v125, %v125
    %v127 = vld [vmem:[#allocation2] sm:$0xf]
    %v128 = vld [vmem:[#allocation2 + $0x4] sm:$0xf]
    %v129 = vld [vmem:[#allocation2 + $0x8] sm:$0xf]
    %v130 = vld [vmem:[#allocation2 + $0xc] sm:$0xf]
    %v131 = vld [vmem:[#allocation2 + $0x10] sm:$0xf]
    %v132 = vld [vmem:[#allocation2 + $0x14] sm:$0xf]
    %v133 = vld [vmem:[#allocation2 + $0x18] sm:$0xf]
    %v134 = vld [vmem:[#allocation2 + $0x1c] sm:$0xf]
    %v135 = vld [vmem:[#allocation2 + $0x20] sm:$0xf]
    %v136 = vld [vmem:[#allocation2 + $0x24] sm:$0xf]
    %v137 = vld [vmem:[#allocation2 + $0x28] sm:$0xf]
    %v138 = vld [vmem:[#allocation2 + $0x2c] sm:$0xf]
    %v139 = vld [vmem:[#allocation2 + $0x30] sm:$0xf]
    %v140 = vld [vmem:[#allocation2 + $0x34] sm:$0xf]
    %v141 = vld [vmem:[#allocation2 + $0x38] sm:$0xf]
    %v142 = vld [vmem:[#allocation2 + $0x3c] sm:$0xf]
    %v159 = vunpack.c.l.b16 %v127
    %v160 = vunpack.c.l.b16 %v128
    %v161 = vunpack.c.l.b16 %v129
    %v162 = vunpack.c.l.b16 %v130
    %v163 = vunpack.c.l.b16 %v131
    %v164 = vunpack.c.l.b16 %v132
    %v165 = vunpack.c.l.b16 %v133
    %v166 = vunpack.c.l.b16 %v134
    %v167 = vunpack.c.l.b16 %v135
    %v168 = vunpack.c.l.b16 %v136
    %v169 = vunpack.c.l.b16 %v137
    %v170 = vunpack.c.l.b16 %v138
    %v171 = vunpack.c.l.b16 %v139
    %v172 = vunpack.c.l.b16 %v140
    %v173 = vunpack.c.l.b16 %v141
    %v174 = vunpack.c.l.b16 %v142
    %v175 = vpack.c.b16 %v160, %v159
    %v176 = vpack.c.b16 %v162, %v161
    %v177 = vpack.c.b16 %v164, %v163
    %v178 = vpack.c.b16 %v166, %v165
    %v179 = vpack.c.b16 %v168, %v167
    %v180 = vpack.c.b16 %v170, %v169
    %v181 = vpack.c.b16 %v172, %v171
    %v182 = vpack.c.b16 %v174, %v173
    %191 = vmatprep.subr.bf16.mxu0 0
    %192 = vmatpush1.bf16.msra.mxu0 %v182
    %193 = vmatprep.subr.bf16.mxu0 0
    %194 = vmatpush1.bf16.msra.mxu0 %v181
    %195 = vmatprep.subr.bf16.mxu0 0
    %196 = vmatpush1.bf16.msra.mxu0 %v180
    %197 = vmatprep.subr.bf16.mxu0 0
    %198 = vmatpush1.bf16.msra.mxu0 %v179
    %199 = vmatprep.subr.bf16.mxu0 0
    %200 = vmatpush1.bf16.msra.mxu0 %v178
    %201 = vmatprep.subr.bf16.mxu0 0
    %202 = vmatpush1.bf16.msra.mxu0 %v177
    %203 = vmatprep.subr.bf16.mxu0 0
    %204 = vmatpush1.bf16.msra.mxu0 %v176
    %205 = vmatprep.subr.bf16.mxu0 0
    %206 = vmatpush1.bf16.msra.mxu0 %v175
    %207 = vmatprep.subr.bf16.mxu0 0
    %208 = vmatpush2.bf16.msra.mxu0 0
    %209 = vmatprep.subr.bf16.mxu0 0
    %210 = vmatpush2.bf16.msra.mxu0 0
    %211 = vmatprep.subr.bf16.mxu0 0
    %212 = vmatpush2.bf16.msra.mxu0 0
    %213 = vmatprep.subr.bf16.mxu0 0
    %214 = vmatpush2.bf16.msra.mxu0 0
    %215 = vmatprep.subr.bf16.mxu0 0
    %216 = vmatpush2.bf16.msra.mxu0 0
    %217 = vmatprep.subr.bf16.mxu0 0
    %218 = vmatpush2.bf16.msra.mxu0 0
    %219 = vmatprep.subr.bf16.mxu0 0
    %220 = vmatpush2.bf16.msra.mxu0 0
    %221 = vmatprep.subr.bf16.mxu0 0
    %222 = vmatpush2.bf16.msra.mxu0 0
    %223 = vmatprep.mubr.bf16.mxu0 0
    %224 = vmatmul.mubr.bf16.gmra.mxu0 %v126
    %v225 = vpop.f32.mrf.mxu0
    %v226 = vadd.f32 0.0, %v225
    %v227 = vpop.f32.mrf.mxu0
    %v228 = vpop.f32.mrf.mxu0
    %v229 = vpop.f32.mrf.mxu0
    %230 = vdwg.mxu0
    %v231 = vmax.f32 %v226, 0.0
    %v232 = vpack.c.bf16 %v231, %v231
    %v233 = vpack.c.bf16 %v117, %v117
    %v234 = vld [vmem:[#allocation5] sm:$0xff]
    %v235 = vld [vmem:[#allocation5 + $0x8] sm:$0xff]
    %v236 = vld [vmem:[#allocation5 + $0x10] sm:$0xff]
    %v237 = vld [vmem:[#allocation5 + $0x18] sm:$0xff]
    %v238 = vld [vmem:[#allocation5 + $0x20] sm:$0xff]
    %v239 = vld [vmem:[#allocation5 + $0x28] sm:$0xff]
    %v240 = vld [vmem:[#allocation5 + $0x30] sm:$0xff]
    %v241 = vld [vmem:[#allocation5 + $0x38] sm:$0xff]
    %v242 = vld [vmem:[#allocation5 + $0x40] sm:$0xff]
    %v243 = vld [vmem:[#allocation5 + $0x48] sm:$0xff]
    %v244 = vld [vmem:[#allocation5 + $0x50] sm:$0xff]
    %v245 = vld [vmem:[#allocation5 + $0x58] sm:$0xff]
    %v246 = vld [vmem:[#allocation5 + $0x60] sm:$0xff]
    %v247 = vld [vmem:[#allocation5 + $0x68] sm:$0xff]
    %v248 = vld [vmem:[#allocation5 + $0x70] sm:$0xff]
    %v249 = vld [vmem:[#allocation5 + $0x78] sm:$0xff]
    %v250 = vld [vmem:[#allocation5 + $0x80] sm:$0xff]
    %v251 = vld [vmem:[#allocation5 + $0x88] sm:$0xff]
    %v252 = vld [vmem:[#allocation5 + $0x90] sm:$0xff]
    %v253 = vld [vmem:[#allocation5 + $0x98] sm:$0xff]
    %v254 = vld [vmem:[#allocation5 + $0xa0] sm:$0xff]
    %v255 = vld [vmem:[#allocation5 + $0xa8] sm:$0xff]
    %v256 = vld [vmem:[#allocation5 + $0xb0] sm:$0xff]
    %v257 = vld [vmem:[#allocation5 + $0xb8] sm:$0xff]
    %v258 = vld [vmem:[#allocation5 + $0xc0] sm:$0xff]
    %v259 = vld [vmem:[#allocation5 + $0xc8] sm:$0xff]
    %v260 = vld [vmem:[#allocation5 + $0xd0] sm:$0xff]
    %v261 = vld [vmem:[#allocation5 + $0xd8] sm:$0xff]
    %v262 = vld [vmem:[#allocation5 + $0xe0] sm:$0xff]
    %v263 = vld [vmem:[#allocation5 + $0xe8] sm:$0xff]
    %v264 = vld [vmem:[#allocation5 + $0xf0] sm:$0xff]
    %v265 = vld [vmem:[#allocation5 + $0xf8] sm:$0xff]
    %v266 = vld [vmem:[%s6] sm:$0x3]
    %v268 = vlaneseq
    %v269 = vshrl.u32 %v268, 7
    %v270 = vsub.s32 0, %v269
    %v271 = vrot.slane %v266, %v270
    %v272 = vlaneseq
    %v273 = vshrl.u32 %v272, 7
    %v274 = vsub.s32 1, %v273
    %v275 = vrot.slane %v266, %v274
    %v310 = vunpack.c.l.b16 %v234
    %v311 = vunpack.c.h.b16 %v234
    %v312 = vunpack.c.l.b16 %v235
    %v313 = vunpack.c.h.b16 %v235
    %v314 = vunpack.c.l.b16 %v236
    %v315 = vunpack.c.h.b16 %v236
    %v316 = vunpack.c.l.b16 %v237
    %v317 = vunpack.c.h.b16 %v237
    %v318 = vunpack.c.l.b16 %v238
    %v319 = vunpack.c.h.b16 %v238
    %v320 = vunpack.c.l.b16 %v239
    %v321 = vunpack.c.h.b16 %v239
    %v322 = vunpack.c.l.b16 %v240
    %v323 = vunpack.c.h.b16 %v240
    %v324 = vunpack.c.l.b16 %v241
    %v325 = vunpack.c.h.b16 %v241
    %v326 = vunpack.c.l.b16 %v242
    %v327 = vunpack.c.h.b16 %v242
    %v328 = vunpack.c.l.b16 %v243
    %v329 = vunpack.c.h.b16 %v243
    %v330 = vunpack.c.l.b16 %v244
    %v331 = vunpack.c.h.b16 %v244
    %v332 = vunpack.c.l.b16 %v245
    %v333 = vunpack.c.h.b16 %v245
    %v334 = vunpack.c.l.b16 %v246
    %v335 = vunpack.c.h.b16 %v246
    %v336 = vunpack.c.l.b16 %v247
    %v337 = vunpack.c.h.b16 %v247
    %v338 = vunpack.c.l.b16 %v248
    %v339 = vunpack.c.h.b16 %v248
    %v340 = vunpack.c.l.b16 %v249
    %v341 = vunpack.c.h.b16 %v249
    %v342 = vunpack.c.l.b16 %v250
    %v343 = vunpack.c.h.b16 %v250
    %v344 = vunpack.c.l.b16 %v251
    %v345 = vunpack.c.h.b16 %v251
    %v346 = vunpack.c.l.b16 %v252
    %v347 = vunpack.c.h.b16 %v252
    %v348 = vunpack.c.l.b16 %v253
    %v349 = vunpack.c.h.b16 %v253
    %v350 = vunpack.c.l.b16 %v254
    %v351 = vunpack.c.h.b16 %v254
    %v352 = vunpack.c.l.b16 %v255
    %v353 = vunpack.c.h.b16 %v255
    %v354 = vunpack.c.l.b16 %v256
    %v355 = vunpack.c.h.b16 %v256
    %v356 = vunpack.c.l.b16 %v257
    %v357 = vunpack.c.h.b16 %v257
    %v358 = vunpack.c.l.b16 %v258
    %v359 = vunpack.c.h.b16 %v258
    %v360 = vunpack.c.l.b16 %v259
    %v361 = vunpack.c.h.b16 %v259
    %v362 = vunpack.c.l.b16 %v260
    %v363 = vunpack.c.h.b16 %v260
    %v364 = vunpack.c.l.b16 %v261
    %v365 = vunpack.c.h.b16 %v261
    %v366 = vunpack.c.l.b16 %v262
    %v367 = vunpack.c.h.b16 %v262
    %v368 = vunpack.c.l.b16 %v263
    %v369 = vunpack.c.h.b16 %v263
    %v370 = vunpack.c.l.b16 %v264
    %v371 = vunpack.c.h.b16 %v264
    %v372 = vunpack.c.l.b16 %v265
    %v373 = vunpack.c.h.b16 %v265
    %v374 = vpack.c.b16 %v312, %v310
    %v375 = vpack.c.b16 %v313, %v311
    %v376 = vpack.c.b16 %v316, %v314
    %v377 = vpack.c.b16 %v317, %v315
    %v378 = vpack.c.b16 %v320, %v318
    %v379 = vpack.c.b16 %v321, %v319
    %v380 = vpack.c.b16 %v324, %v322
    %v381 = vpack.c.b16 %v325, %v323
    %v382 = vpack.c.b16 %v328, %v326
    %v383 = vpack.c.b16 %v329, %v327
    %v384 = vpack.c.b16 %v332, %v330
    %v385 = vpack.c.b16 %v333, %v331
    %v386 = vpack.c.b16 %v336, %v334
    %v387 = vpack.c.b16 %v337, %v335
    %v388 = vpack.c.b16 %v340, %v338
    %v389 = vpack.c.b16 %v341, %v339
    %v390 = vpack.c.b16 %v344, %v342
    %v391 = vpack.c.b16 %v345, %v343
    %v392 = vpack.c.b16 %v348, %v346
    %v393 = vpack.c.b16 %v349, %v347
    %v394 = vpack.c.b16 %v352, %v350
    %v395 = vpack.c.b16 %v353, %v351
    %v396 = vpack.c.b16 %v356, %v354
    %v397 = vpack.c.b16 %v357, %v355
    %v398 = vpack.c.b16 %v360, %v358
    %v399 = vpack.c.b16 %v361, %v359
    %v400 = vpack.c.b16 %v364, %v362
    %v401 = vpack.c.b16 %v365, %v363
    %v402 = vpack.c.b16 %v368, %v366
    %v403 = vpack.c.b16 %v369, %v367
    %v404 = vpack.c.b16 %v372, %v370
    %v405 = vpack.c.b16 %v373, %v371
    %438 = vmatprep.subr.bf16.mxu0 %v389
    %439 = vmatpush1.bf16.msra.mxu0 %v388
    %440 = vmatprep.subr.bf16.mxu0 %v387
    %441 = vmatpush1.bf16.msra.mxu0 %v386
    %442 = vmatprep.subr.bf16.mxu0 %v385
    %443 = vmatpush1.bf16.msra.mxu0 %v384
    %444 = vmatprep.subr.bf16.mxu0 %v383
    %445 = vmatpush1.bf16.msra.mxu0 %v382
    %446 = vmatprep.subr.bf16.mxu0 %v381
    %447 = vmatpush1.bf16.msra.mxu0 %v380
    %448 = vmatprep.subr.bf16.mxu0 %v379
    %449 = vmatpush1.bf16.msra.mxu0 %v378
    %450 = vmatprep.subr.bf16.mxu0 %v377
    %451 = vmatpush1.bf16.msra.mxu0 %v376
    %452 = vmatprep.subr.bf16.mxu0 %v375
    %453 = vmatpush1.bf16.msra.mxu0 %v374
    %454 = vmatprep.subr.bf16.mxu0 %v405
    %455 = vmatpush2.bf16.msra.mxu0 %v404
    %456 = vmatprep.subr.bf16.mxu0 %v403
    %457 = vmatpush2.bf16.msra.mxu0 %v402
    %458 = vmatprep.subr.bf16.mxu0 %v401
    %459 = vmatpush2.bf16.msra.mxu0 %v400
    %460 = vmatprep.subr.bf16.mxu0 %v399
    %461 = vmatpush2.bf16.msra.mxu0 %v398
    %462 = vmatprep.subr.bf16.mxu0 %v397
    %463 = vmatpush2.bf16.msra.mxu0 %v396
    %464 = vmatprep.subr.bf16.mxu0 %v395
    %465 = vmatpush2.bf16.msra.mxu0 %v394
    %466 = vmatprep.subr.bf16.mxu0 %v393
    %467 = vmatpush2.bf16.msra.mxu0 %v392
    %468 = vmatprep.subr.bf16.mxu0 %v391
    %469 = vmatpush2.bf16.msra.mxu0 %v390
    %470 = vmatprep.mubr.bf16.mxu0 %v233
    %471 = vmatmul.mubr.bf16.gmra.mxu0 %v232
    %v472 = vpop.f32.mrf.mxu0
    %v473 = vadd.f32 %v271, %v472
    %v474 = vpop.f32.mrf.mxu0
    %v475 = vadd.f32 %v275, %v474
    %v476 = vpop.f32.mrf.mxu0
    %v477 = vpop.f32.mrf.mxu0
    %478 = vdwg.mxu0
    %v479 = vxor.u32 %v473, 2147483648
    %v480 = vmul.f32 %v479, 1.442695
    %v481 = vpow.pop %v480
    %v482 = vadd.f32 %v481, 1.0
    %v483 = vrcp.pop %v482
    %v484 = vmul.f32 1.0, %v483
    %v485 = vxor.u32 %v475, 2147483648
    %v486 = vmul.f32 %v485, 1.442695
    %v487 = vpow.pop %v486
    %v488 = vadd.f32 %v487, 1.0
    %v489 = vrcp.pop %v488
    %v490 = vmul.f32 1.0, %v489
    %v491 = vld [vmem:[#allocation7] sm:$0xf]
    %v492 = vld [vmem:[#allocation7 + $0x4] sm:$0xf]
    %v493 = vld [vmem:[#allocation7 + $0x8] sm:$0xf]
    %v494 = vld [vmem:[#allocation7 + $0xc] sm:$0xf]
    %v495 = vld [vmem:[#allocation7 + $0x10] sm:$0xf]
    %v496 = vld [vmem:[#allocation7 + $0x14] sm:$0xf]
    %v497 = vld [vmem:[#allocation7 + $0x18] sm:$0xf]
    %v498 = vld [vmem:[#allocation7 + $0x1c] sm:$0xf]
    %v499 = vld [vmem:[#allocation7 + $0x20] sm:$0xf]
    %v500 = vld [vmem:[#allocation7 + $0x24] sm:$0xf]
    %v501 = vld [vmem:[#allocation7 + $0x28] sm:$0xf]
    %v502 = vld [vmem:[#allocation7 + $0x2c] sm:$0xf]
    %v503 = vld [vmem:[#allocation7 + $0x30] sm:$0xf]
    %v504 = vld [vmem:[#allocation7 + $0x34] sm:$0xf]
    %v505 = vld [vmem:[#allocation7 + $0x38] sm:$0xf]
    %v506 = vld [vmem:[#allocation7 + $0x3c] sm:$0xf]
    %v507 = vld [vmem:[%s7] sm:$0x1]
    %v509 = vlaneseq
    %v510 = vshrl.u32 %v509, 7
    %v511 = vsub.s32 0, %v510
    %v512 = vrot.slane %v507, %v511
    %v530 = vunpack.c.l.b16 %v491
    %v531 = vunpack.c.l.b16 %v492
    %v532 = vunpack.c.l.b16 %v493
    %v533 = vunpack.c.l.b16 %v494
    %v534 = vunpack.c.l.b16 %v495
    %v535 = vunpack.c.l.b16 %v496
    %v536 = vunpack.c.l.b16 %v497
    %v537 = vunpack.c.l.b16 %v498
    %v538 = vunpack.c.l.b16 %v499
    %v539 = vunpack.c.l.b16 %v500
    %v540 = vunpack.c.l.b16 %v501
    %v541 = vunpack.c.l.b16 %v502
    %v542 = vunpack.c.l.b16 %v503
    %v543 = vunpack.c.l.b16 %v504
    %v544 = vunpack.c.l.b16 %v505
    %v545 = vunpack.c.l.b16 %v506
    %v546 = vpack.c.b16 %v531, %v530
    %v547 = vpack.c.b16 %v533, %v532
    %v548 = vpack.c.b16 %v535, %v534
    %v549 = vpack.c.b16 %v537, %v536
    %v550 = vpack.c.b16 %v539, %v538
    %v551 = vpack.c.b16 %v541, %v540
    %v552 = vpack.c.b16 %v543, %v542
    %v553 = vpack.c.b16 %v545, %v544
    %562 = vmatprep.subr.bf16.mxu0 0
    %563 = vmatpush1.bf16.msra.mxu0 %v553
    %564 = vmatprep.subr.bf16.mxu0 0
    %565 = vmatpush1.bf16.msra.mxu0 %v552
    %566 = vmatprep.subr.bf16.mxu0 0
    %567 = vmatpush1.bf16.msra.mxu0 %v551
    %568 = vmatprep.subr.bf16.mxu0 0
    %569 = vmatpush1.bf16.msra.mxu0 %v550
    %570 = vmatprep.subr.bf16.mxu0 0
    %571 = vmatpush1.bf16.msra.mxu0 %v549
    %572 = vmatprep.subr.bf16.mxu0 0
    %573 = vmatpush1.bf16.msra.mxu0 %v548
    %574 = vmatprep.subr.bf16.mxu0 0
    %575 = vmatpush1.bf16.msra.mxu0 %v547
    %576 = vmatprep.subr.bf16.mxu0 0
    %577 = vmatpush1.bf16.msra.mxu0 %v546
    %578 = vmatprep.subr.bf16.mxu0 0
    %579 = vmatpush2.bf16.msra.mxu0 0
    %580 = vmatprep.subr.bf16.mxu0 0
    %581 = vmatpush2.bf16.msra.mxu0 0
    %582 = vmatprep.subr.bf16.mxu0 0
    %583 = vmatpush2.bf16.msra.mxu0 0
    %584 = vmatprep.subr.bf16.mxu0 0
    %585 = vmatpush2.bf16.msra.mxu0 0
    %586 = vmatprep.subr.bf16.mxu0 0
    %587 = vmatpush2.bf16.msra.mxu0 0
    %588 = vmatprep.subr.bf16.mxu0 0
    %589 = vmatpush2.bf16.msra.mxu0 0
    %590 = vmatprep.subr.bf16.mxu0 0
    %591 = vmatpush2.bf16.msra.mxu0 0
    %592 = vmatprep.subr.bf16.mxu0 0
    %593 = vmatpush2.bf16.msra.mxu0 0
    %594 = vmatprep.mubr.bf16.mxu0 0
    %595 = vmatmul.mubr.bf16.gmra.mxu0 %v232
    %v596 = vpop.f32.mrf.mxu0
    %v597 = vadd.f32 %v512, %v596
    %v598 = vpop.f32.mrf.mxu0
    %v599 = vpop.f32.mrf.mxu0
    %v600 = vpop.f32.mrf.mxu0
    %601 = vdwg.mxu0
    %v602 = vld [vmem:[#allocation8] sm:$0xf]
    %v603 = vld [vmem:[#allocation8 + $0x4] sm:$0xf]
    %v604 = vld [vmem:[#allocation8 + $0x8] sm:$0xf]
    %v605 = vld [vmem:[#allocation8 + $0xc] sm:$0xf]
    %v606 = vld [vmem:[#allocation8 + $0x10] sm:$0xf]
    %v607 = vld [vmem:[#allocation8 + $0x14] sm:$0xf]
    %v608 = vld [vmem:[#allocation8 + $0x18] sm:$0xf]
    %v609 = vld [vmem:[#allocation8 + $0x1c] sm:$0xf]
    %v610 = vld [vmem:[#allocation8 + $0x20] sm:$0xf]
    %v611 = vld [vmem:[#allocation8 + $0x24] sm:$0xf]
    %v612 = vld [vmem:[#allocation8 + $0x28] sm:$0xf]
    %v613 = vld [vmem:[#allocation8 + $0x2c] sm:$0xf]
    %v614 = vld [vmem:[#allocation8 + $0x30] sm:$0xf]
    %v615 = vld [vmem:[#allocation8 + $0x34] sm:$0xf]
    %v616 = vld [vmem:[#allocation8 + $0x38] sm:$0xf]
    %v617 = vld [vmem:[#allocation8 + $0x3c] sm:$0xf]
    %v618 = vld [vmem:[%s8] sm:$0x1]
    %v620 = vlaneseq
    %v621 = vshrl.u32 %v620, 7
    %v622 = vsub.s32 0, %v621
    %v623 = vrot.slane %v618, %v622
    %v641 = vunpack.c.l.b16 %v602
    %v642 = vunpack.c.l.b16 %v603
    %v643 = vunpack.c.l.b16 %v604
    %v644 = vunpack.c.l.b16 %v605
    %v645 = vunpack.c.l.b16 %v606
    %v646 = vunpack.c.l.b16 %v607
    %v647 = vunpack.c.l.b16 %v608
    %v648 = vunpack.c.l.b16 %v609
    %v649 = vunpack.c.l.b16 %v610
    %v650 = vunpack.c.l.b16 %v611
    %v651 = vunpack.c.l.b16 %v612
    %v652 = vunpack.c.l.b16 %v613
    %v653 = vunpack.c.l.b16 %v614
    %v654 = vunpack.c.l.b16 %v615
    %v655 = vunpack.c.l.b16 %v616
    %v656 = vunpack.c.l.b16 %v617
    %v657 = vpack.c.b16 %v642, %v641
    %v658 = vpack.c.b16 %v644, %v643
    %v659 = vpack.c.b16 %v646, %v645
    %v660 = vpack.c.b16 %v648, %v647
    %v661 = vpack.c.b16 %v650, %v649
    %v662 = vpack.c.b16 %v652, %v651
    %v663 = vpack.c.b16 %v654, %v653
    %v664 = vpack.c.b16 %v656, %v655
    %673 = vmatprep.subr.bf16.mxu0 0
    %674 = vmatpush1.bf16.msra.mxu0 %v664
    %675 = vmatprep.subr.bf16.mxu0 0
    %676 = vmatpush1.bf16.msra.mxu0 %v663
    %677 = vmatprep.subr.bf16.mxu0 0
    %678 = vmatpush1.bf16.msra.mxu0 %v662
    %679 = vmatprep.subr.bf16.mxu0 0
    %680 = vmatpush1.bf16.msra.mxu0 %v661
    %681 = vmatprep.subr.bf16.mxu0 0
    %682 = vmatpush1.bf16.msra.mxu0 %v660
    %683 = vmatprep.subr.bf16.mxu0 0
    %684 = vmatpush1.bf16.msra.mxu0 %v659
    %685 = vmatprep.subr.bf16.mxu0 0
    %686 = vmatpush1.bf16.msra.mxu0 %v658
    %687 = vmatprep.subr.bf16.mxu0 0
    %688 = vmatpush1.bf16.msra.mxu0 %v657
    %689 = vmatprep.subr.bf16.mxu0 0
    %690 = vmatpush2.bf16.msra.mxu0 0
    %691 = vmatprep.subr.bf16.mxu0 0
    %692 = vmatpush2.bf16.msra.mxu0 0
    %693 = vmatprep.subr.bf16.mxu0 0
    %694 = vmatpush2.bf16.msra.mxu0 0
    %695 = vmatprep.subr.bf16.mxu0 0
    %696 = vmatpush2.bf16.msra.mxu0 0
    %697 = vmatprep.subr.bf16.mxu0 0
    %698 = vmatpush2.bf16.msra.mxu0 0
    %699 = vmatprep.subr.bf16.mxu0 0
    %700 = vmatpush2.bf16.msra.mxu0 0
    %701 = vmatprep.subr.bf16.mxu0 0
    %702 = vmatpush2.bf16.msra.mxu0 0
    %703 = vmatprep.subr.bf16.mxu0 0
    %704 = vmatpush2.bf16.msra.mxu0 0
    %705 = vmatprep.mubr.bf16.mxu0 0
    %706 = vmatmul.mubr.bf16.gmra.mxu0 %v233
    %v707 = vpop.f32.mrf.mxu0
    %v708 = vadd.f32 %v623, %v707
    %v709 = vpop.f32.mrf.mxu0
    %v710 = vpop.f32.mrf.mxu0
    %v711 = vpop.f32.mrf.mxu0
    %712 = vdwg.mxu0
    %v713 = vmul.f32 %v484, %v708
    %v714 = vadd.f32 %v597, %v713
    %v715 = vtanh.pop %v714
    %v716 = vsub.f32 1.0, %v490
    %v717 = vmul.f32 %v716, %v715
    %v718 = vmul.f32 %v490, %v117
    %v719 = vadd.f32 %v717, %v718
    %v720 = vpack.c.bf16 %v719, %v719
    %v721 = vld [vmem:[#allocation10] sm:$0xf]
    %v722 = vld [vmem:[#allocation10 + $0x4] sm:$0xf]
    %v723 = vld [vmem:[#allocation10 + $0x8] sm:$0xf]
    %v724 = vld [vmem:[#allocation10 + $0xc] sm:$0xf]
    %v725 = vld [vmem:[#allocation10 + $0x10] sm:$0xf]
    %v726 = vld [vmem:[#allocation10 + $0x14] sm:$0xf]
    %v727 = vld [vmem:[#allocation10 + $0x18] sm:$0xf]
    %v728 = vld [vmem:[#allocation10 + $0x1c] sm:$0xf]
    %v729 = vld [vmem:[#allocation10 + $0x20] sm:$0xf]
    %v730 = vld [vmem:[#allocation10 + $0x24] sm:$0xf]
    %v731 = vld [vmem:[#allocation10 + $0x28] sm:$0xf]
    %v732 = vld [vmem:[#allocation10 + $0x2c] sm:$0xf]
    %v733 = vld [vmem:[#allocation10 + $0x30] sm:$0xf]
    %v734 = vld [vmem:[#allocation10 + $0x34] sm:$0xf]
    %v735 = vld [vmem:[#allocation10 + $0x38] sm:$0xf]
    %v736 = vld [vmem:[#allocation10 + $0x3c] sm:$0xf]
    %v737 = vld [vmem:[%s10] sm:$0x1]
    %v739 = vlaneseq
    %v740 = vshrl.u32 %v739, 7
    %v741 = vsub.s32 0, %v740
    %v742 = vrot.slane %v737, %v741
    %v760 = vunpack.c.l.b16 %v721
    %v761 = vunpack.c.l.b16 %v722
    %v762 = vunpack.c.l.b16 %v723
    %v763 = vunpack.c.l.b16 %v724
    %v764 = vunpack.c.l.b16 %v725
    %v765 = vunpack.c.l.b16 %v726
    %v766 = vunpack.c.l.b16 %v727
    %v767 = vunpack.c.l.b16 %v728
    %v768 = vunpack.c.l.b16 %v729
    %v769 = vunpack.c.l.b16 %v730
    %v770 = vunpack.c.l.b16 %v731
    %v771 = vunpack.c.l.b16 %v732
    %v772 = vunpack.c.l.b16 %v733
    %v773 = vunpack.c.l.b16 %v734
    %v774 = vunpack.c.l.b16 %v735
    %v775 = vunpack.c.l.b16 %v736
    %v776 = vpack.c.b16 %v761, %v760
    %v777 = vpack.c.b16 %v763, %v762
    %v778 = vpack.c.b16 %v765, %v764
    %v779 = vpack.c.b16 %v767, %v766
    %v780 = vpack.c.b16 %v769, %v768
    %v781 = vpack.c.b16 %v771, %v770
    %v782 = vpack.c.b16 %v773, %v772
    %v783 = vpack.c.b16 %v775, %v774
    %792 = vmatprep.subr.bf16.mxu0 0
    %793 = vmatpush1.bf16.msra.mxu0 %v783
    %794 = vmatprep.subr.bf16.mxu0 0
    %795 = vmatpush1.bf16.msra.mxu0 %v782
    %796 = vmatprep.subr.bf16.mxu0 0
    %797 = vmatpush1.bf16.msra.mxu0 %v781
    %798 = vmatprep.subr.bf16.mxu0 0
    %799 = vmatpush1.bf16.msra.mxu0 %v780
    %800 = vmatprep.subr.bf16.mxu0 0
    %801 = vmatpush1.bf16.msra.mxu0 %v779
    %802 = vmatprep.subr.bf16.mxu0 0
    %803 = vmatpush1.bf16.msra.mxu0 %v778
    %804 = vmatprep.subr.bf16.mxu0 0
    %805 = vmatpush1.bf16.msra.mxu0 %v777
    %806 = vmatprep.subr.bf16.mxu0 0
    %807 = vmatpush1.bf16.msra.mxu0 %v776
    %808 = vmatprep.subr.bf16.mxu0 0
    %809 = vmatpush2.bf16.msra.mxu0 0
    %810 = vmatprep.subr.bf16.mxu0 0
    %811 = vmatpush2.bf16.msra.mxu0 0
    %812 = vmatprep.subr.bf16.mxu0 0
    %813 = vmatpush2.bf16.msra.mxu0 0
    %814 = vmatprep.subr.bf16.mxu0 0
    %815 = vmatpush2.bf16.msra.mxu0 0
    %816 = vmatprep.subr.bf16.mxu0 0
    %817 = vmatpush2.bf16.msra.mxu0 0
    %818 = vmatprep.subr.bf16.mxu0 0
    %819 = vmatpush2.bf16.msra.mxu0 0
    %820 = vmatprep.subr.bf16.mxu0 0
    %821 = vmatpush2.bf16.msra.mxu0 0
    %822 = vmatprep.subr.bf16.mxu0 0
    %823 = vmatpush2.bf16.msra.mxu0 0
    %824 = vmatprep.mubr.bf16.mxu0 0
    %825 = vmatmul.mubr.bf16.gmra.mxu0 %v720
    %v826 = vpop.f32.mrf.mxu0
    %v827 = vadd.f32 %v742, %v826
    %v828 = vpop.f32.mrf.mxu0
    %v829 = vpop.f32.mrf.mxu0
    %v830 = vpop.f32.mrf.mxu0
    %831 = vdwg.mxu0
    %832 = vmax.xlane.f32.xlu0 %v827
    %v833 = vpop.xlane.xlu0 %832
    %v834 = vsub.f32 %v827, %v833
    %v835 = vmul.f32 %v834, 1.442695
    %v836 = vpow.pop %v835
    %837 = vadd.xlane.f32.xlu0 %v836
    %v838 = vpop.xlane.xlu0 %837
    %v839 = vlog2.pop %v838
    %v840 = vmul.f32 %v839, 0.6931472
    %v841 = vsub.f32 %v834, %v840
    %842 = vst [vmem:[#allocation11] sm:$0xff] %v841
    %843 = vst [vmem:[#allocation12] sm:$0xff] %v719
    // Predicated region
    $region70: #{_decode.1} parent=1 // pred_check
      _
    $region71: #{_decode.1} parent=1 // pred_check_branch
      %845 = sbr.rel (0) target = $region73
    $region72: #{_decode.1} parent=1 // pred_region
      %s847 = ssub.s32 128, 128
      %848 = vsyncadd [#allocation4], %s847
      %s850 = sshll.u32 [#allocation11], 4
      %s851 = int_to_ptr.vmem [resolvable:$true] %s850
      %853 = dma.vmem_to_hbm [thread:$0]  %s851, 128, %s11, [#allocation4]
    $region73: #{_decode.1} parent=1 // pred_fallthru
      _
    // Predicated region
    $region74: #{_decode.1} parent=1 // pred_check
      _
    $region75: #{_decode.1} parent=1 // pred_check_branch
      %855 = sbr.rel (0) target = $region77
    $region76: #{_decode.1} parent=1 // pred_region
      %s857 = ssub.s32 128, 128
      %858 = vsyncadd [#allocation13], %s857
      %s860 = sshll.u32 [#allocation12], 4
      %s861 = int_to_ptr.vmem [resolvable:$true] %s860
      %863 = dma.vmem_to_hbm [thread:$0]  %s861, 128, %s12, [#allocation13]
    $region77: #{_decode.1} parent=1 // pred_fallthru
      _
    // Predicated region
    $region78: #{_decode.1} parent=1 // pred_check
      _
    $region79: #{_decode.1} parent=1 // pred_check_branch
      %865 = sbr.rel (0) target = $region81
    $region80: #{_decode.1} parent=1 // pred_region
      %866 = dma.done [#allocation4], 128
    $region81: #{_decode.1} parent=1 // pred_fallthru
      _
    // Predicated region
    $region82: #{_decode.1} parent=1 // pred_check
      _
    $region83: #{_decode.1} parent=1 // pred_check_branch
      %868 = sbr.rel (0) target = $region85
    $region84: #{_decode.1} parent=1 // pred_region
      %869 = dma.done [#allocation13], 128
    $region85: #{_decode.1} parent=1 // pred_fallthru
      _
    %870 = vsyncpa [#allocation3], 1
    %871 = vsyncpa [#allocation6], 1
    %872 = vsyncpa [#allocation9], 1
    %873 = vsyncpa [#allocation4], 1
    %874 = vsyncpa [#allocation13], 1

</llo_original>
